<compile_context>
chip_gen: v5e
topology: v5e:2x2
jax: 0.10.0
libtpu: 0.0.40
codegen_flags: <defaults>
</compile_context>

<pallas_src>
import functools

import jax
import jax.numpy as jnp
from jax.experimental import pallas as pl
from jax.experimental.pallas import tpu as pltpu


def _round_up(a, b):
    return (a + b - 1) // b * b


# ----------------------------------------------------------------------------
# Kernel 1: fused node encoder + fused first-layer projections (node-level).
#   node_emb = relu(x @ W_enc + b_enc)
#   [P_src | P_dst] = node_emb @ [W1_src | W1_dst]      (single MXU matmul)
# ----------------------------------------------------------------------------
def _node_proj_kernel(x_ref, wenc_ref, benc_ref, w1_ref, ps_ref, pd_ref, *, hidden):
    h = jnp.dot(x_ref[...], wenc_ref[...], preferred_element_type=jnp.float32)
    h = jnp.maximum(h + benc_ref[...], 0.0)                         # [tile_n, emb] f32
    p = jnp.dot(h.astype(w1_ref.dtype), w1_ref[...],
                preferred_element_type=jnp.float32)                 # [tile_n, 2*hidden]
    ps_ref[...] = p[:, :hidden].astype(ps_ref.dtype)
    pd_ref[...] = p[:, hidden:].astype(pd_ref.dtype)


def node_projections(x, params, *, tile_n=512, out_dtype=jnp.bfloat16):
    n, f_in = x.shape
    emb = params["w_enc"].shape[1]
    hidden = params["w1"].shape[1]
    tile_n = max(8, min(tile_n, _round_up(n, 8)))
    n_pad = _round_up(n, tile_n)

    # bf16 streaming for the matmuls (f32 accumulation inside the kernel).
    x_p = jnp.pad(x, ((0, n_pad - n), (0, 0))).astype(jnp.bfloat16)
    w_enc = params["w_enc"].astype(jnp.bfloat16)
    # Fuse src/dst halves of W1 into one [emb, 2*hidden] weight (wider MXU N-dim).
    w1cat = jnp.concatenate([params["w1"][:emb], params["w1"][emb:]],
                            axis=1).astype(jnp.bfloat16)
    b_enc = params["b_enc"]                                        # f32 [1, emb]

    ps, pd = pl.pallas_call(
        functools.partial(_node_proj_kernel, hidden=hidden),
        out_shape=(jax.ShapeDtypeStruct((n_pad, hidden), out_dtype),
                   jax.ShapeDtypeStruct((n_pad, hidden), out_dtype)),
        grid=(n_pad // tile_n,),
        in_specs=[
            pl.BlockSpec((tile_n, f_in), lambda i: (i, 0)),
            pl.BlockSpec((f_in, emb), lambda i: (0, 0)),
            pl.BlockSpec((1, emb), lambda i: (0, 0)),
            pl.BlockSpec((emb, 2 * hidden), lambda i: (0, 0)),
        ],
        out_specs=(pl.BlockSpec((tile_n, hidden), lambda i: (i, 0)),
                   pl.BlockSpec((tile_n, hidden), lambda i: (i, 0))),
        compiler_params=pltpu.CompilerParams(dimension_semantics=("parallel",)),
    )(x_p, w_enc, b_enc, w1cat)
    return ps[:n], pd[:n]


# ----------------------------------------------------------------------------
# Kernel 2: per-edge fused MLP + eval-BN + gumbel-softmax column 1.
# Edges on the sublane axis, hidden on the lane axis (transpose-free layout):
#   h   = relu(P_src[e] + P_dst[e] + b1)                 [tile_e, hidden]
#   y   = sum(h * w_eff, axis=-1) + z                    [tile_e, 1]   (VPU + XLU)
#   out = hard ? (y > 0) : sigmoid(y)
# where w_eff = gamma*rsqrt(var+eps)*(W2[:,1]-W2[:,0]) / tau  and
#       z     = ((beta - mean*scale)@w_d + (b2_1 - b2_0) + g1 - g0) / tau
# are folded in the wrapper (eval-mode BN with fixed running stats).
# ----------------------------------------------------------------------------
def _edge_kernel(hs_ref, hd_ref, b1_ref, weff_ref, z_ref, out_ref, *, hard):
    h = hs_ref[...].astype(jnp.float32) + hd_ref[...].astype(jnp.float32) + b1_ref[...]
    h = jnp.maximum(h, 0.0)                                        # [tile_e, hidden]
    y = jnp.sum(h * weff_ref[...], axis=-1, keepdims=True) + z_ref[...]
    if hard:
        # forward value of straight-through hard gumbel-softmax, column 1
        out_ref[...] = (y > 0.0).astype(jnp.float32)
    else:
        # softmax over 2 classes, column 1 == sigmoid(y1 - y0)
        out_ref[...] = jax.nn.sigmoid(y)


def edge_gumbel_weights(hs, hd, b1, w_eff, z, *, hard, tile_e=2048):
    """hs/hd: [E, hidden] gathered projections (bf16); z: [E] f32; returns [E] f32."""
    e, hidden = hs.shape
    # hidden should be a multiple of 8 to avoid wasteful sublane padding (not required).
    # Keep >= ~8 grid blocks so both v7x TensorCores stay busy on small graphs.
    tile_e = min(tile_e, max(128, _round_up(pl.cdiv(e, 8), 128)))
    e_pad = _round_up(e, tile_e)
    pad = e_pad - e
    hs_p = jnp.pad(hs, ((0, pad), (0, 0)))
    hd_p = jnp.pad(hd, ((0, pad), (0, 0)))
    z_p = jnp.pad(z, (0, pad)).reshape(e_pad, 1).astype(jnp.float32)
    b1_row = b1.reshape(1, hidden).astype(jnp.float32)
    weff_row = w_eff.reshape(1, hidden).astype(jnp.float32)

    # Explicit VMEM budget: double-buffered bf16 input tiles + f32 z/out tiles
    # plus headroom; clamped to stay within v5e/v6e/v7x scoped/physical limits.
    per_step = 2 * tile_e * hidden * hs_p.dtype.itemsize + 2 * tile_e * 4
    vmem_limit = int(min(max(2 * per_step + (4 << 20), 16 << 20), 48 << 20))

    n_blk = e_pad // tile_e
    out = pl.pallas_call(
        functools.partial(_edge_kernel, hard=hard),
        out_shape=jax.ShapeDtypeStruct((e_pad, 1), jnp.float32),
        grid=(n_blk,),
        in_specs=[
            pl.BlockSpec((tile_e, hidden), lambda i: (i, 0)),   # P_src gathered (bf16)
            pl.BlockSpec((tile_e, hidden), lambda i: (i, 0)),   # P_dst gathered (bf16)
            pl.BlockSpec((1, hidden), lambda i: (0, 0)),        # b1 (row)
            pl.BlockSpec((1, hidden), lambda i: (0, 0)),        # folded w_eff (row)
            pl.BlockSpec((tile_e, 1), lambda i: (i, 0)),        # folded per-edge bias+noise
        ],
        out_specs=pl.BlockSpec((tile_e, 1), lambda i: (i, 0)),
        compiler_params=pltpu.CompilerParams(
            dimension_semantics=("parallel",),
            vmem_limit_bytes=vmem_limit),
    )(hs_p, hd_p, b1_row, weff_row, z_p)
    return out.reshape(e_pad)[:e]


# ----------------------------------------------------------------------------
# Full forward (glue: single-pass gather / BN fold in XLA; compute: two kernels)
# ----------------------------------------------------------------------------
@functools.partial(jax.jit, static_argnames=("return_soft", "tile_n", "tile_e"))
def graph_augmentation_forward(x, edge_index, params, gumbel, temperature,
                               return_soft=False, tile_n=512, tile_e=2048):
    p_src, p_dst = node_projections(x, params, tile_n=tile_n)     # bf16 [N, hidden] x2
    src = edge_index[0]
    dst = edge_index[1]
    # One XLA gather pass per table, [E, hidden] bf16, no transpose (edges -> sublanes).
    hs = jnp.take(p_src, src, axis=0)
    hd = jnp.take(p_dst, dst, axis=0)

    # Fold eval-mode BatchNorm + second Linear column-difference + 1/tau.
    eps = 1e-5
    gamma = params["bn_gamma"].reshape(-1)
    beta = params["bn_beta"].reshape(-1)
    mean = params["bn_mean"].reshape(-1)
    var = params["bn_var"].reshape(-1)
    scale = gamma * jax.lax.rsqrt(var + eps)
    w_d = params["w2"][:, 1] - params["w2"][:, 0]
    w_eff = (scale * w_d) / temperature
    b_eff = jnp.dot(beta - mean * scale, w_d) + (params["b2"][0, 1] - params["b2"][0, 0])
    g_diff = gumbel[:, 1] - gumbel[:, 0]                           # logistic noise
    z = (g_diff + b_eff) / temperature

    return edge_gumbel_weights(hs, hd, params["b1"], w_eff, z,
                               hard=not return_soft, tile_e=tile_e)


# ----------------------------------------------------------------------------
# Pure-JAX (unfused, f32) reference for correctness checking
# ----------------------------------------------------------------------------
def reference_forward(x, edge_index, params, gumbel, temperature, return_soft):
    node_emb = jnp.maximum(x @ params["w_enc"] + params["b_enc"], 0.0)
    src, dst = edge_index[0], edge_index[1]
    feats = jnp.concatenate([node_emb[src], node_emb[dst]], axis=-1)
    h = jnp.maximum(feats @ params["w1"] + params["b1"], 0.0)
    eps = 1e-5
    scale = params["bn_gamma"] * jax.lax.rsqrt(params["bn_var"] + eps)
    h = (h - params["bn_mean"]) * scale + params["bn_beta"]
    logits = h @ params["w2"] + params["b2"]
    y = (logits + gumbel) / temperature
    if return_soft:
        return jax.nn.softmax(y, axis=-1)[:, 1]
    return (y[:, 1] > y[:, 0]).astype(jnp.float32)


def init_params(key, f_in, emb_dim, hidden_dim):
    ks = jax.random.split(key, 6)
    s = 0.1
    return {
        "w_enc": s * jax.random.normal(ks[0], (f_in, emb_dim), jnp.float32),
        "b_enc": s * jax.random.normal(ks[1], (1, emb_dim), jnp.float32),
        "w1": s * jax.random.normal(ks[2], (2 * emb_dim, hidden_dim), jnp.float32),
        "b1": s * jax.random.normal(ks[3], (1, hidden_dim), jnp.float32),
        "bn_gamma": jnp.ones((1, hidden_dim), jnp.float32),
        "bn_beta": jnp.zeros((1, hidden_dim), jnp.float32),
        "bn_mean": jnp.zeros((1, hidden_dim), jnp.float32),
        "bn_var": jnp.ones((1, hidden_dim), jnp.float32),
        "w2": s * jax.random.normal(ks[4], (hidden_dim, 2), jnp.float32),
        "b2": s * jax.random.normal(ks[5], (1, 2), jnp.float32),
    }


if __name__ == "__main__":
    N, F_IN, EMB_DIM, HIDDEN_DIM, E = 16, 8, 16, 32, 128
    TEMPERATURE = 0.5

    key = jax.random.PRNGKey(0)
    k_x, k_e, k_p, k_g = jax.random.split(key, 4)

    x = jax.random.normal(k_x, (N, F_IN), jnp.float32)
    edge_index = jax.random.randint(k_e, (2, E), 0, N, dtype=jnp.int32)
    params = init_params(k_p, F_IN, EMB_DIM, HIDDEN_DIM)
    # gumbel noise = -log(-log(U)); matches torch.nn.functional.gumbel_softmax noise
    gumbel = jax.random.gumbel(k_g, (E, 2), jnp.float32)

    hard_k = graph_augmentation_forward(x, edge_index, params, gumbel,
                                        TEMPERATURE, return_soft=False)
    soft_k = graph_augmentation_forward(x, edge_index, params, gumbel,
                                        TEMPERATURE, return_soft=True)
    jax.block_until_ready((hard_k, soft_k))

    # Correctness vs. the unfused pure-JAX f32 reference (kernel streams bf16,
    # so tolerances account for bf16 activation/weight rounding).
    hard_r = reference_forward(x, edge_index, params, gumbel, TEMPERATURE, False)
    soft_r = reference_forward(x, edge_index, params, gumbel, TEMPERATURE, True)

    assert hard_k.shape == (E,) and soft_k.shape == (E,)
    assert bool(jnp.all((hard_k == 0.0) | (hard_k == 1.0)))
    assert float(jnp.max(jnp.abs(soft_k - soft_r))) < 1e-2
    away_from_boundary = jnp.abs(soft_r - 0.5) > 2e-2
    assert bool(jnp.all(jnp.where(away_from_boundary, hard_k == hard_r, True)))

    print("KERNEL_OK")
</pallas_src>

<mosaic_0001>
module attributes {stable_mosaic.version = 11 : i64} {
  func.func @_node_proj_kernel(%arg0: i32, %arg1: memref<16x8xbf16, #tpu.memory_space<vmem>>, %arg2: memref<8x16xbf16, #tpu.memory_space<vmem>>, %arg3: memref<1x16xf32, #tpu.memory_space<vmem>>, %arg4: memref<16x64xbf16, #tpu.memory_space<vmem>>, %arg5: memref<16x32xbf16, #tpu.memory_space<vmem>>, %arg6: memref<16x32xbf16, #tpu.memory_space<vmem>>) attributes {dimension_semantics = [#tpu.dimension_semantics<parallel>], iteration_bounds = array<i64: 1>, scalar_prefetch = 0 : i64, scratch_operands = 0 : i64, tpu.core_type = #tpu.core_type<tc>, window_params = [{transform_indices = @transform_0, window_bounds = array<i64: 16, 8>}, {pipeline_mode = #tpu.pipeline_mode<synchronous>, transform_indices = @transform_1, window_bounds = array<i64: 8, 16>}, {pipeline_mode = #tpu.pipeline_mode<synchronous>, transform_indices = @transform_2, window_bounds = array<i64: 1, 16>}, {pipeline_mode = #tpu.pipeline_mode<synchronous>, transform_indices = @transform_3, window_bounds = array<i64: 16, 64>}, {transform_indices = @transform_4, window_bounds = array<i64: 16, 32>}, {transform_indices = @transform_5, window_bounds = array<i64: 16, 32>}]} {
    %c0 = arith.constant 0 : index
    %c0_0 = arith.constant 0 : index
    %0 = vector.load %arg1[%c0, %c0_0] : memref<16x8xbf16, #tpu.memory_space<vmem>>, vector<16x8xbf16>
    %c0_1 = arith.constant 0 : index
    %c0_2 = arith.constant 0 : index
    %1 = vector.load %arg2[%c0_1, %c0_2] : memref<8x16xbf16, #tpu.memory_space<vmem>>, vector<8x16xbf16>
    %cst = arith.constant dense<0.000000e+00> : vector<16x16xf32>
    %2 = tpu.matmul %0, %1, %cst {dimension_numbers = #tpu.dot_dimension_numbers<[1], [0], [0], [1], [0, 0, 1, 1], [], []>} : vector<16x8xbf16>, vector<8x16xbf16>, vector<16x16xf32> -> vector<16x16xf32>
    %c0_3 = arith.constant 0 : index
    %c0_4 = arith.constant 0 : index
    %3 = vector.load %arg3[%c0_3, %c0_4] : memref<1x16xf32, #tpu.memory_space<vmem>>, vector<1x16xf32>
    %4 = vector.broadcast %3 : vector<1x16xf32> to vector<16x16xf32>
    %5 = arith.addf %2, %4 : vector<16x16xf32>
    %cst_5 = arith.constant 0.000000e+00 : f32
    %6 = vector.broadcast %cst_5 : f32 to vector<16x16xf32>
    %7 = arith.maximumf %5, %6 : vector<16x16xf32>
    %8 = arith.truncf %7 : vector<16x16xf32> to vector<16x16xbf16>
    %c0_6 = arith.constant 0 : index
    %c0_7 = arith.constant 0 : index
    %9 = vector.load %arg4[%c0_6, %c0_7] : memref<16x64xbf16, #tpu.memory_space<vmem>>, vector<16x64xbf16>
    %cst_8 = arith.constant dense<0.000000e+00> : vector<16x64xf32>
    %10 = tpu.matmul %8, %9, %cst_8 {dimension_numbers = #tpu.dot_dimension_numbers<[1], [0], [0], [1], [0, 0, 1, 1], [], []>} : vector<16x16xbf16>, vector<16x64xbf16>, vector<16x64xf32> -> vector<16x64xf32>
    %11 = vector.extract_strided_slice %10 {offsets = [0, 0], sizes = [16, 32], strides = [1, 1]} : vector<16x64xf32> to vector<16x32xf32>
    %12 = arith.truncf %11 : vector<16x32xf32> to vector<16x32xbf16>
    %c0_9 = arith.constant 0 : index
    %c0_10 = arith.constant 0 : index
    %13 = vector.load %arg5[%c0_9, %c0_10] : memref<16x32xbf16, #tpu.memory_space<vmem>>, vector<16x32xbf16>
    tpu.vector_store %arg5[%c0_9, %c0_10], %12 {strides = array<i32>} : memref<16x32xbf16, #tpu.memory_space<vmem>>, vector<16x32xbf16>,
    %14 = vector.extract_strided_slice %10 {offsets = [0, 32], sizes = [16, 32], strides = [1, 1]} : vector<16x64xf32> to vector<16x32xf32>
    %15 = arith.truncf %14 : vector<16x32xf32> to vector<16x32xbf16>
    %c0_11 = arith.constant 0 : index
    %c0_12 = arith.constant 0 : index
    %16 = vector.load %arg6[%c0_11, %c0_12] : memref<16x32xbf16, #tpu.memory_space<vmem>>, vector<16x32xbf16>
    tpu.vector_store %arg6[%c0_11, %c0_12], %15 {strides = array<i32>} : memref<16x32xbf16, #tpu.memory_space<vmem>>, vector<16x32xbf16>,
    return
  }
  func.func @transform_0(%arg0: i32) -> (i32, i32) {
    %c0_i32 = arith.constant 0 : i32
    %c0_i32_0 = arith.constant 0 : i32
    return %arg0, %c0_i32 : i32, i32
  }
  func.func @transform_1(%arg0: i32) -> (i32, i32) {
    %c0_i32 = arith.constant 0 : i32
    %c0_i32_0 = arith.constant 0 : i32
    %c0_i32_1 = arith.constant 0 : i32
    return %c0_i32, %c0_i32_0 : i32, i32
  }
  func.func @transform_2(%arg0: i32) -> (i32, i32) {
    %c0_i32 = arith.constant 0 : i32
    %c0_i32_0 = arith.constant 0 : i32
    %c0_i32_1 = arith.constant 0 : i32
    return %c0_i32, %c0_i32_0 : i32, i32
  }
  func.func @transform_3(%arg0: i32) -> (i32, i32) {
    %c0_i32 = arith.constant 0 : i32
    %c0_i32_0 = arith.constant 0 : i32
    %c0_i32_1 = arith.constant 0 : i32
    return %c0_i32, %c0_i32_0 : i32, i32
  }
  func.func @transform_4(%arg0: i32) -> (i32, i32) {
    %c0_i32 = arith.constant 0 : i32
    %c0_i32_0 = arith.constant 0 : i32
    return %arg0, %c0_i32 : i32, i32
  }
  func.func @transform_5(%arg0: i32) -> (i32, i32) {
    %c0_i32 = arith.constant 0 : i32
    %c0_i32_0 = arith.constant 0 : i32
    return %arg0, %c0_i32 : i32, i32
  }
}

module attributes {stable_mosaic.version = 11 : i64} {
  func.func @_edge_kernel(%arg0: i32, %arg1: memref<128x32xbf16, #tpu.memory_space<vmem>>, %arg2: memref<128x32xbf16, #tpu.memory_space<vmem>>, %arg3: memref<1x32xf32, #tpu.memory_space<vmem>>, %arg4: memref<1x32xf32, #tpu.memory_space<vmem>>, %arg5: memref<128x1xf32, #tpu.memory_space<vmem>>, %arg6: memref<128x1xf32, #tpu.memory_space<vmem>>) attributes {dimension_semantics = [#tpu.dimension_semantics<parallel>], iteration_bounds = array<i64: 1>, scalar_prefetch = 0 : i64, scratch_operands = 0 : i64, tpu.core_type = #tpu.core_type<tc>, window_params = [{transform_indices = @transform_0, window_bounds = array<i64: 128, 32>}, {transform_indices = @transform_1, window_bounds = array<i64: 128, 32>}, {pipeline_mode = #tpu.pipeline_mode<synchronous>, transform_indices = @transform_2, window_bounds = array<i64: 1, 32>}, {pipeline_mode = #tpu.pipeline_mode<synchronous>, transform_indices = @transform_3, window_bounds = array<i64: 1, 32>}, {transform_indices = @transform_4, window_bounds = array<i64: 128, 1>}, {transform_indices = @transform_5, window_bounds = array<i64: 128, 1>}]} {
    %c0 = arith.constant 0 : index
    %c0_0 = arith.constant 0 : index
    %0 = vector.load %arg1[%c0, %c0_0] : memref<128x32xbf16, #tpu.memory_space<vmem>>, vector<128x32xbf16>
    %1 = arith.extf %0 : vector<128x32xbf16> to vector<128x32xf32>
    %c0_1 = arith.constant 0 : index
    %c0_2 = arith.constant 0 : index
    %2 = vector.load %arg2[%c0_1, %c0_2] : memref<128x32xbf16, #tpu.memory_space<vmem>>, vector<128x32xbf16>
    %3 = arith.extf %2 : vector<128x32xbf16> to vector<128x32xf32>
    %4 = arith.addf %1, %3 : vector<128x32xf32>
    %c0_3 = arith.constant 0 : index
    %c0_4 = arith.constant 0 : index
    %5 = vector.load %arg3[%c0_3, %c0_4] : memref<1x32xf32, #tpu.memory_space<vmem>>, vector<1x32xf32>
    %6 = vector.broadcast %5 : vector<1x32xf32> to vector<128x32xf32>
    %7 = arith.addf %4, %6 : vector<128x32xf32>
    %cst = arith.constant 0.000000e+00 : f32
    %8 = vector.broadcast %cst : f32 to vector<128x32xf32>
    %9 = arith.maximumf %7, %8 : vector<128x32xf32>
    %c0_5 = arith.constant 0 : index
    %c0_6 = arith.constant 0 : index
    %10 = vector.load %arg4[%c0_5, %c0_6] : memref<1x32xf32, #tpu.memory_space<vmem>>, vector<1x32xf32>
    %11 = vector.broadcast %10 : vector<1x32xf32> to vector<128x32xf32>
    %12 = arith.mulf %9, %11 : vector<128x32xf32>
    %cst_7 = arith.constant dense<0.000000e+00> : vector<128xf32>
    %13 = vector.multi_reduction <add>, %12, %cst_7 [1] : vector<128x32xf32> to vector<128xf32>
    %14 = vector.shape_cast %13 : vector<128xf32> to vector<128x1xf32>
    %c0_8 = arith.constant 0 : index
    %c0_9 = arith.constant 0 : index
    %15 = vector.load %arg5[%c0_8, %c0_9] : memref<128x1xf32, #tpu.memory_space<vmem>>, vector<128x1xf32>
    %16 = arith.addf %14, %15 : vector<128x1xf32>
    %cst_10 = arith.constant 0.000000e+00 : f32
    %17 = vector.broadcast %cst_10 : f32 to vector<128x1xf32>
    %18 = arith.cmpf ogt, %16, %17 : vector<128x1xf32>
    %19 = arith.extui %18 : vector<128x1xi1> to vector<128x1xi32>
    %20 = arith.sitofp %19 : vector<128x1xi32> to vector<128x1xf32>
    %c0_11 = arith.constant 0 : index
    %c0_12 = arith.constant 0 : index
    %21 = vector.load %arg6[%c0_11, %c0_12] : memref<128x1xf32, #tpu.memory_space<vmem>>, vector<128x1xf32>
    tpu.vector_store %arg6[%c0_11, %c0_12], %20 {strides = array<i32>} : memref<128x1xf32, #tpu.memory_space<vmem>>, vector<128x1xf32>,
    return
  }
  func.func @transform_0(%arg0: i32) -> (i32, i32) {
    %c0_i32 = arith.constant 0 : i32
    %c0_i32_0 = arith.constant 0 : i32
    return %arg0, %c0_i32 : i32, i32
  }
  func.func @transform_1(%arg0: i32) -> (i32, i32) {
    %c0_i32 = arith.constant 0 : i32
    %c0_i32_0 = arith.constant 0 : i32
    return %arg0, %c0_i32 : i32, i32
  }
  func.func @transform_2(%arg0: i32) -> (i32, i32) {
    %c0_i32 = arith.constant 0 : i32
    %c0_i32_0 = arith.constant 0 : i32
    %c0_i32_1 = arith.constant 0 : i32
    return %c0_i32, %c0_i32_0 : i32, i32
  }
  func.func @transform_3(%arg0: i32) -> (i32, i32) {
    %c0_i32 = arith.constant 0 : i32
    %c0_i32_0 = arith.constant 0 : i32
    %c0_i32_1 = arith.constant 0 : i32
    return %c0_i32, %c0_i32_0 : i32, i32
  }
  func.func @transform_4(%arg0: i32) -> (i32, i32) {
    %c0_i32 = arith.constant 0 : i32
    %c0_i32_0 = arith.constant 0 : i32
    return %arg0, %c0_i32 : i32, i32
  }
  func.func @transform_5(%arg0: i32) -> (i32, i32) {
    %c0_i32 = arith.constant 0 : i32
    %c0_i32_0 = arith.constant 0 : i32
    return %arg0, %c0_i32 : i32, i32
  }
}

</mosaic_0001>

<llo_original>
// kernel: graph_augmentation_forward.2
$region0: #{graph_augmentation_forward.2}
  #allocation0 [shape = 'u32[]', space=smem, size = 0x4, offset = 0x4, fixed_abs, tag = 'smem constant byte address 0x4 - core index']
  #allocation1 [shape = 'u32[72,128]{1,0:T(1,128)}', space=vmem, size = 0x9000, scoped, tag = 'internal scratch']
  %s0 = inlined_call_operand.vmem [shape: bf16[16,8], index: 0, kind: input, shape index: {}]
  %s1 = inlined_call_operand.vmem [shape: bf16[8,16], index: 1, kind: input, shape index: {}]
  %s2 = inlined_call_operand.vmem [shape: f32[1,16], index: 2, kind: input, shape index: {}]
  %s3 = inlined_call_operand.vmem [shape: bf16[16,64], index: 3, kind: input, shape index: {}]
  %s4 = inlined_call_operand.vmem [shape: bf16[16,32], index: 4, kind: output, shape index: {0}]
  %s5 = inlined_call_operand.vmem [shape: bf16[16,32], index: 5, kind: output, shape index: {1}]
  %6 = xla_tuple %s4, %s5
  %s7 = sld [smem:[#allocation0]]
  $region34: #{graph_augmentation_forward.2} parent=0
    _
  %s9 = ssub.s32 1, %s7
  %s10 = scalar_select 0, %s9, %s7
  // Predicated region
  $region2: #{graph_augmentation_forward.2} parent=0 // pred_check
    _
  $region3: #{graph_augmentation_forward.2} parent=0 // pred_check_branch
    %12 = sbr.rel (0) target = $region5
  $region4: #{graph_augmentation_forward.2} parent=0 // pred_region
    _
  $region5: #{graph_augmentation_forward.2} parent=0 // pred_fallthru
    _
  // Predicated region
  $region6: #{graph_augmentation_forward.2} parent=0 // pred_check
    _
  $region7: #{graph_augmentation_forward.2} parent=0 // pred_check_branch
    %14 = sbr.rel (0) target = $region9
  $region8: #{graph_augmentation_forward.2} parent=0 // pred_region
    _
  $region9: #{graph_augmentation_forward.2} parent=0 // pred_fallthru
    _
  // Predicated region
  $region10: #{graph_augmentation_forward.2} parent=0 // pred_check
    _
  $region11: #{graph_augmentation_forward.2} parent=0 // pred_check_branch
    %16 = sbr.rel (0) target = $region13
  $region12: #{graph_augmentation_forward.2} parent=0 // pred_region
    _
  $region13: #{graph_augmentation_forward.2} parent=0 // pred_fallthru
    _
  // Predicated region
  $region14: #{graph_augmentation_forward.2} parent=0 // pred_check
    _
  $region15: #{graph_augmentation_forward.2} parent=0 // pred_check_branch
    %18 = sbr.rel (0) target = $region17
  $region16: #{graph_augmentation_forward.2} parent=0 // pred_region
    _
  $region17: #{graph_augmentation_forward.2} parent=0 // pred_fallthru
    _
  %v20 = vld [vmem:[%s0] sm:$0xf]
  %v21 = vld [vmem:[%s0 + $0x4] sm:$0xf]
  %v22 = vld [vmem:[%s1] sm:$0xf]
  %v23 = vld [vmem:[%s2] sm:$0x1]
  %v25 = vperm.slane %v23, 0
  %v29 = vunpack.c.l.b16 %v20
  %v30 = vunpack.c.l.b16 %v21
  %v31 = vpack.c.b16 %v30, %v29
  %vm32 = vcmask 64512
  %v34 = vsel %vm32, %v31, 0
  %vm36 = vcmask 1043456
  %v38 = vsel %vm36, %v22, 0
  %40 = vmatpush.bf16.msra.mxu0 0
  %41 = vmatpush.bf16.msra.mxu0 0
  %42 = vmatpush.bf16.msra.mxu0 0
  %43 = vmatpush.bf16.msra.mxu0 0
  %44 = vmatpush.bf16.msra.mxu0 0
  %45 = vmatpush.bf16.msra.mxu0 0
  %46 = vmatpush.bf16.msra.mxu0 0
  %47 = vmatpush.bf16.msra.mxu0 %v38
  %48 = vmatmul.bf16.gmra.mxu0 %v34
  %v49 = vpop.f32.mrf.mxu0
  %v50 = vadd.f32 %v25, %v49
  %v51 = vpop.f32.mrf.mxu0
  %v52 = vadd.f32 %v25, %v51
  %53 = vdwg.mxu0
  %v54 = vmax.f32 %v50, 0.0
  %v55 = vmax.f32 %v52, 0.0
  %v56 = vpack.c.bf16 %v55, %v54
  %v57 = vld [vmem:[%s3] sm:$0xf]
  %v58 = vld [vmem:[%s3 + $0x4] sm:$0xf]
  %v61 = vunpack.c.l.b16 %v57
  %v62 = vunpack.c.l.b16 %v58
  %v63 = vpack.c.b16 %v62, %v61
  %vm65 = vcmask 130048
  %v67 = vsel %vm65, %v56, 0
  %69 = vmatpush.bf16.msra.mxu0 0
  %70 = vmatpush.bf16.msra.mxu0 0
  %71 = vmatpush.bf16.msra.mxu0 0
  %72 = vmatpush.bf16.msra.mxu0 0
  %73 = vmatpush.bf16.msra.mxu0 0
  %74 = vmatpush.bf16.msra.mxu0 0
  %75 = vmatpush.bf16.msra.mxu0 0
  %76 = vmatpush.bf16.msra.mxu0 %v63
  %77 = vmatmul.bf16.gmra.mxu0 %v67
  %v78 = vpop.f32.mrf.mxu0
  %v79 = vadd.f32 0.0, %v78
  %v80 = vpop.f32.mrf.mxu0
  %v81 = vadd.f32 0.0, %v80
  %82 = vdwg.mxu0
  %v83 = vpack.c.bf16 %v79, %v79
  %v84 = vpack.c.bf16 %v81, %v81
  %vm85 = vcmask 257024
  %86 = vst.msk [vmem:[%s4] sm:$0xf] %vm85, %v83
  %87 = vst.msk [vmem:[%s4 + $0x4] sm:$0xf] %vm85, %v84
  %90 = vrot.lane.b32.xlu0 %v83, 96
  %v91 = vpop.permute.xlu0 %90
  %92 = vrot.lane.b32.xlu0 %v84, 96
  %v93 = vpop.permute.xlu0 %92
  %96 = vst.msk [vmem:[%s5] sm:$0xf] %vm85, %v91
  %97 = vst.msk [vmem:[%s5 + $0x4] sm:$0xf] %vm85, %v93
  // Predicated region
  $region18: #{graph_augmentation_forward.2} parent=0 // pred_check
    _
  $region19: #{graph_augmentation_forward.2} parent=0 // pred_check_branch
    %99 = sbr.rel (0) target = $region21
  $region20: #{graph_augmentation_forward.2} parent=0 // pred_region
    _
  $region21: #{graph_augmentation_forward.2} parent=0 // pred_fallthru
    _
  // Predicated region
  $region22: #{graph_augmentation_forward.2} parent=0 // pred_check
    _
  $region23: #{graph_augmentation_forward.2} parent=0 // pred_check_branch
    %101 = sbr.rel (0) target = $region25
  $region24: #{graph_augmentation_forward.2} parent=0 // pred_region
    _
  $region25: #{graph_augmentation_forward.2} parent=0 // pred_fallthru
    _
  // Predicated region
  $region26: #{graph_augmentation_forward.2} parent=0 // pred_check
    _
  $region27: #{graph_augmentation_forward.2} parent=0 // pred_check_branch
    %103 = sbr.rel (0) target = $region29
  $region28: #{graph_augmentation_forward.2} parent=0 // pred_region
    _
  $region29: #{graph_augmentation_forward.2} parent=0 // pred_fallthru
    _
  // Predicated region
  $region30: #{graph_augmentation_forward.2} parent=0 // pred_check
    _
  $region31: #{graph_augmentation_forward.2} parent=0 // pred_check_branch
    %105 = sbr.rel (0) target = $region33
  $region32: #{graph_augmentation_forward.2} parent=0 // pred_region
    _
  $region33: #{graph_augmentation_forward.2} parent=0 // pred_fallthru
    _

// kernel: graph_augmentation_forward.3
$region0: #{graph_augmentation_forward.3}
  #allocation0 [shape = 'u32[]', space=smem, size = 0x4, offset = 0x4, fixed_abs, tag = 'smem constant byte address 0x4 - core index']
  #allocation1 [shape = 'u32[72,128]{1,0:T(1,128)}', space=vmem, size = 0x9000, scoped, tag = 'internal scratch']
  %s0 = inlined_call_operand.vmem [shape: bf16[128,32], index: 0, kind: input, shape index: {}]
  %s1 = inlined_call_operand.vmem [shape: bf16[128,32], index: 1, kind: input, shape index: {}]
  %s2 = inlined_call_operand.vmem [shape: f32[1,32], index: 2, kind: input, shape index: {}]
  %s3 = inlined_call_operand.vmem [shape: f32[1,32], index: 3, kind: input, shape index: {}]
  %s4 = inlined_call_operand.vmem [shape: f32[128,1], index: 4, kind: input, shape index: {}]
  %s5 = inlined_call_operand.vmem [shape: f32[128,1], index: 5, kind: output, shape index: {}]
  %s6 = sld [smem:[#allocation0]]
  $region30: #{graph_augmentation_forward.3} parent=0
    _
  %s8 = ssub.s32 1, %s6
  %s9 = scalar_select 0, %s8, %s6
  // Predicated region
  $region2: #{graph_augmentation_forward.3} parent=0 // pred_check
    _
  $region3: #{graph_augmentation_forward.3} parent=0 // pred_check_branch
    %11 = sbr.rel (0) target = $region5
  $region4: #{graph_augmentation_forward.3} parent=0 // pred_region
    _
  $region5: #{graph_augmentation_forward.3} parent=0 // pred_fallthru
    _
  // Predicated region
  $region6: #{graph_augmentation_forward.3} parent=0 // pred_check
    _
  $region7: #{graph_augmentation_forward.3} parent=0 // pred_check_branch
    %13 = sbr.rel (0) target = $region9
  $region8: #{graph_augmentation_forward.3} parent=0 // pred_region
    _
  $region9: #{graph_augmentation_forward.3} parent=0 // pred_fallthru
    _
  // Predicated region
  $region10: #{graph_augmentation_forward.3} parent=0 // pred_check
    _
  $region11: #{graph_augmentation_forward.3} parent=0 // pred_check_branch
    %15 = sbr.rel (0) target = $region13
  $region12: #{graph_augmentation_forward.3} parent=0 // pred_region
    _
  $region13: #{graph_augmentation_forward.3} parent=0 // pred_fallthru
    _
  // Predicated region
  $region14: #{graph_augmentation_forward.3} parent=0 // pred_check
    _
  $region15: #{graph_augmentation_forward.3} parent=0 // pred_check_branch
    %17 = sbr.rel (0) target = $region17
  $region16: #{graph_augmentation_forward.3} parent=0 // pred_region
    _
  $region17: #{graph_augmentation_forward.3} parent=0 // pred_fallthru
    _
  // Predicated region
  $region18: #{graph_augmentation_forward.3} parent=0 // pred_check
    _
  $region19: #{graph_augmentation_forward.3} parent=0 // pred_check_branch
    %19 = sbr.rel (0) target = $region21
  $region20: #{graph_augmentation_forward.3} parent=0 // pred_region
    _
  $region21: #{graph_augmentation_forward.3} parent=0 // pred_fallthru
    _
  %v20 = vld [vmem:[%s0] sm:$0xf]
  %v21 = vld [vmem:[%s0 + $0x4] sm:$0xf]
  %v22 = vld [vmem:[%s0 + $0x8] sm:$0xf]
  %v23 = vld [vmem:[%s0 + $0xc] sm:$0xf]
  %v24 = vld [vmem:[%s0 + $0x10] sm:$0xf]
  %v25 = vld [vmem:[%s0 + $0x14] sm:$0xf]
  %v26 = vld [vmem:[%s0 + $0x18] sm:$0xf]
  %v27 = vld [vmem:[%s0 + $0x1c] sm:$0xf]
  %v28 = vld [vmem:[%s0 + $0x20] sm:$0xf]
  %v29 = vld [vmem:[%s0 + $0x24] sm:$0xf]
  %v30 = vld [vmem:[%s0 + $0x28] sm:$0xf]
  %v31 = vld [vmem:[%s0 + $0x2c] sm:$0xf]
  %v32 = vld [vmem:[%s0 + $0x30] sm:$0xf]
  %v33 = vld [vmem:[%s0 + $0x34] sm:$0xf]
  %v34 = vld [vmem:[%s0 + $0x38] sm:$0xf]
  %v35 = vld [vmem:[%s0 + $0x3c] sm:$0xf]
  %v36 = vunpack.c.l.bf16 %v20
  %v37 = vunpack.c.l.bf16 %v21
  %v38 = vunpack.c.l.bf16 %v22
  %v39 = vunpack.c.l.bf16 %v23
  %v40 = vunpack.c.l.bf16 %v24
  %v41 = vunpack.c.l.bf16 %v25
  %v42 = vunpack.c.l.bf16 %v26
  %v43 = vunpack.c.l.bf16 %v27
  %v44 = vunpack.c.l.bf16 %v28
  %v45 = vunpack.c.l.bf16 %v29
  %v46 = vunpack.c.l.bf16 %v30
  %v47 = vunpack.c.l.bf16 %v31
  %v48 = vunpack.c.l.bf16 %v32
  %v49 = vunpack.c.l.bf16 %v33
  %v50 = vunpack.c.l.bf16 %v34
  %v51 = vunpack.c.l.bf16 %v35
  %v52 = vld [vmem:[%s1] sm:$0xf]
  %v53 = vld [vmem:[%s1 + $0x4] sm:$0xf]
  %v54 = vld [vmem:[%s1 + $0x8] sm:$0xf]
  %v55 = vld [vmem:[%s1 + $0xc] sm:$0xf]
  %v56 = vld [vmem:[%s1 + $0x10] sm:$0xf]
  %v57 = vld [vmem:[%s1 + $0x14] sm:$0xf]
  %v58 = vld [vmem:[%s1 + $0x18] sm:$0xf]
  %v59 = vld [vmem:[%s1 + $0x1c] sm:$0xf]
  %v60 = vld [vmem:[%s1 + $0x20] sm:$0xf]
  %v61 = vld [vmem:[%s1 + $0x24] sm:$0xf]
  %v62 = vld [vmem:[%s1 + $0x28] sm:$0xf]
  %v63 = vld [vmem:[%s1 + $0x2c] sm:$0xf]
  %v64 = vld [vmem:[%s1 + $0x30] sm:$0xf]
  %v65 = vld [vmem:[%s1 + $0x34] sm:$0xf]
  %v66 = vld [vmem:[%s1 + $0x38] sm:$0xf]
  %v67 = vld [vmem:[%s1 + $0x3c] sm:$0xf]
  %v68 = vunpack.c.l.bf16 %v52
  %v69 = vunpack.c.l.bf16 %v53
  %v70 = vunpack.c.l.bf16 %v54
  %v71 = vunpack.c.l.bf16 %v55
  %v72 = vunpack.c.l.bf16 %v56
  %v73 = vunpack.c.l.bf16 %v57
  %v74 = vunpack.c.l.bf16 %v58
  %v75 = vunpack.c.l.bf16 %v59
  %v76 = vunpack.c.l.bf16 %v60
  %v77 = vunpack.c.l.bf16 %v61
  %v78 = vunpack.c.l.bf16 %v62
  %v79 = vunpack.c.l.bf16 %v63
  %v80 = vunpack.c.l.bf16 %v64
  %v81 = vunpack.c.l.bf16 %v65
  %v82 = vunpack.c.l.bf16 %v66
  %v83 = vunpack.c.l.bf16 %v67
  %v84 = vadd.f32 %v36, %v68
  %v85 = vadd.f32 %v37, %v69
  %v86 = vadd.f32 %v38, %v70
  %v87 = vadd.f32 %v39, %v71
  %v88 = vadd.f32 %v40, %v72
  %v89 = vadd.f32 %v41, %v73
  %v90 = vadd.f32 %v42, %v74
  %v91 = vadd.f32 %v43, %v75
  %v92 = vadd.f32 %v44, %v76
  %v93 = vadd.f32 %v45, %v77
  %v94 = vadd.f32 %v46, %v78
  %v95 = vadd.f32 %v47, %v79
  %v96 = vadd.f32 %v48, %v80
  %v97 = vadd.f32 %v49, %v81
  %v98 = vadd.f32 %v50, %v82
  %v99 = vadd.f32 %v51, %v83
  %v100 = vld [vmem:[%s2] sm:$0x1]
  %v102 = vperm.slane %v100, 0
  %v104 = vadd.f32 %v84, %v102
  %v105 = vadd.f32 %v85, %v102
  %v106 = vadd.f32 %v86, %v102
  %v107 = vadd.f32 %v87, %v102
  %v108 = vadd.f32 %v88, %v102
  %v109 = vadd.f32 %v89, %v102
  %v110 = vadd.f32 %v90, %v102
  %v111 = vadd.f32 %v91, %v102
  %v112 = vadd.f32 %v92, %v102
  %v113 = vadd.f32 %v93, %v102
  %v114 = vadd.f32 %v94, %v102
  %v115 = vadd.f32 %v95, %v102
  %v116 = vadd.f32 %v96, %v102
  %v117 = vadd.f32 %v97, %v102
  %v118 = vadd.f32 %v98, %v102
  %v119 = vadd.f32 %v99, %v102
  %v120 = vmax.f32 %v104, 0.0
  %v121 = vmax.f32 %v105, 0.0
  %v122 = vmax.f32 %v106, 0.0
  %v123 = vmax.f32 %v107, 0.0
  %v124 = vmax.f32 %v108, 0.0
  %v125 = vmax.f32 %v109, 0.0
  %v126 = vmax.f32 %v110, 0.0
  %v127 = vmax.f32 %v111, 0.0
  %v128 = vmax.f32 %v112, 0.0
  %v129 = vmax.f32 %v113, 0.0
  %v130 = vmax.f32 %v114, 0.0
  %v131 = vmax.f32 %v115, 0.0
  %v132 = vmax.f32 %v116, 0.0
  %v133 = vmax.f32 %v117, 0.0
  %v134 = vmax.f32 %v118, 0.0
  %v135 = vmax.f32 %v119, 0.0
  %v136 = vld [vmem:[%s3] sm:$0x1]
  %v138 = vperm.slane %v136, 0
  %v140 = vmul.f32 %v120, %v138
  %v141 = vmul.f32 %v121, %v138
  %v142 = vmul.f32 %v122, %v138
  %v143 = vmul.f32 %v123, %v138
  %v144 = vmul.f32 %v124, %v138
  %v145 = vmul.f32 %v125, %v138
  %v146 = vmul.f32 %v126, %v138
  %v147 = vmul.f32 %v127, %v138
  %v148 = vmul.f32 %v128, %v138
  %v149 = vmul.f32 %v129, %v138
  %v150 = vmul.f32 %v130, %v138
  %v151 = vmul.f32 %v131, %v138
  %v152 = vmul.f32 %v132, %v138
  %v153 = vmul.f32 %v133, %v138
  %v154 = vmul.f32 %v134, %v138
  %v155 = vmul.f32 %v135, %v138
  %vm156 = vcmask 261120
  %v157 = vsel %vm156, %v140, 0.0
  %158 = vadd.xlane.f32.xlu0 %v157
  %v159 = vpop.xlane.xlu0 %158
  %v160 = vsel %vm156, %v141, 0.0
  %161 = vadd.xlane.f32.xlu0 %v160
  %v162 = vpop.xlane.xlu0 %161
  %v163 = vsel %vm156, %v142, 0.0
  %164 = vadd.xlane.f32.xlu0 %v163
  %v165 = vpop.xlane.xlu0 %164
  %v166 = vsel %vm156, %v143, 0.0
  %167 = vadd.xlane.f32.xlu0 %v166
  %v168 = vpop.xlane.xlu0 %167
  %v169 = vsel %vm156, %v144, 0.0
  %170 = vadd.xlane.f32.xlu0 %v169
  %v171 = vpop.xlane.xlu0 %170
  %v172 = vsel %vm156, %v145, 0.0
  %173 = vadd.xlane.f32.xlu0 %v172
  %v174 = vpop.xlane.xlu0 %173
  %v175 = vsel %vm156, %v146, 0.0
  %176 = vadd.xlane.f32.xlu0 %v175
  %v177 = vpop.xlane.xlu0 %176
  %v178 = vsel %vm156, %v147, 0.0
  %179 = vadd.xlane.f32.xlu0 %v178
  %v180 = vpop.xlane.xlu0 %179
  %v181 = vsel %vm156, %v148, 0.0
  %182 = vadd.xlane.f32.xlu0 %v181
  %v183 = vpop.xlane.xlu0 %182
  %v184 = vsel %vm156, %v149, 0.0
  %185 = vadd.xlane.f32.xlu0 %v184
  %v186 = vpop.xlane.xlu0 %185
  %v187 = vsel %vm156, %v150, 0.0
  %188 = vadd.xlane.f32.xlu0 %v187
  %v189 = vpop.xlane.xlu0 %188
  %v190 = vsel %vm156, %v151, 0.0
  %191 = vadd.xlane.f32.xlu0 %v190
  %v192 = vpop.xlane.xlu0 %191
  %v193 = vsel %vm156, %v152, 0.0
  %194 = vadd.xlane.f32.xlu0 %v193
  %v195 = vpop.xlane.xlu0 %194
  %v196 = vsel %vm156, %v153, 0.0
  %197 = vadd.xlane.f32.xlu0 %v196
  %v198 = vpop.xlane.xlu0 %197
  %v199 = vsel %vm156, %v154, 0.0
  %200 = vadd.xlane.f32.xlu0 %v199
  %v201 = vpop.xlane.xlu0 %200
  %v202 = vsel %vm156, %v155, 0.0
  %203 = vadd.xlane.f32.xlu0 %v202
  %v204 = vpop.xlane.xlu0 %203
  %v205 = vld [vmem:[%s4] sm:$0xff]
  %v206 = vld [vmem:[%s4 + $0x8] sm:$0xff]
  %v207 = vld [vmem:[%s4 + $0x10] sm:$0xff]
  %v208 = vld [vmem:[%s4 + $0x18] sm:$0xff]
  %v209 = vld [vmem:[%s4 + $0x20] sm:$0xff]
  %v210 = vld [vmem:[%s4 + $0x28] sm:$0xff]
  %v211 = vld [vmem:[%s4 + $0x30] sm:$0xff]
  %v212 = vld [vmem:[%s4 + $0x38] sm:$0xff]
  %v213 = vld [vmem:[%s4 + $0x40] sm:$0xff]
  %v214 = vld [vmem:[%s4 + $0x48] sm:$0xff]
  %v215 = vld [vmem:[%s4 + $0x50] sm:$0xff]
  %v216 = vld [vmem:[%s4 + $0x58] sm:$0xff]
  %v217 = vld [vmem:[%s4 + $0x60] sm:$0xff]
  %v218 = vld [vmem:[%s4 + $0x68] sm:$0xff]
  %v219 = vld [vmem:[%s4 + $0x70] sm:$0xff]
  %v220 = vld [vmem:[%s4 + $0x78] sm:$0xff]
  %v221 = vadd.f32 %v159, %v205
  %v222 = vadd.f32 %v162, %v206
  %v223 = vadd.f32 %v165, %v207
  %v224 = vadd.f32 %v168, %v208
  %v225 = vadd.f32 %v171, %v209
  %v226 = vadd.f32 %v174, %v210
  %v227 = vadd.f32 %v177, %v211
  %v228 = vadd.f32 %v180, %v212
  %v229 = vadd.f32 %v183, %v213
  %v230 = vadd.f32 %v186, %v214
  %v231 = vadd.f32 %v189, %v215
  %v232 = vadd.f32 %v192, %v216
  %v233 = vadd.f32 %v195, %v217
  %v234 = vadd.f32 %v198, %v218
  %v235 = vadd.f32 %v201, %v219
  %v236 = vadd.f32 %v204, %v220
  %vm237 = vcmp.gt.f32.partialorder %v221, 0.0
  %vm238 = vcmp.gt.f32.partialorder %v222, 0.0
  %vm239 = vcmp.gt.f32.partialorder %v223, 0.0
  %vm240 = vcmp.gt.f32.partialorder %v224, 0.0
  %vm241 = vcmp.gt.f32.partialorder %v225, 0.0
  %vm242 = vcmp.gt.f32.partialorder %v226, 0.0
  %vm243 = vcmp.gt.f32.partialorder %v227, 0.0
  %vm244 = vcmp.gt.f32.partialorder %v228, 0.0
  %vm245 = vcmp.gt.f32.partialorder %v229, 0.0
  %vm246 = vcmp.gt.f32.partialorder %v230, 0.0
  %vm247 = vcmp.gt.f32.partialorder %v231, 0.0
  %vm248 = vcmp.gt.f32.partialorder %v232, 0.0
  %vm249 = vcmp.gt.f32.partialorder %v233, 0.0
  %vm250 = vcmp.gt.f32.partialorder %v234, 0.0
  %vm251 = vcmp.gt.f32.partialorder %v235, 0.0
  %vm252 = vcmp.gt.f32.partialorder %v236, 0.0
  %v253 = vsel %vm237, 1, 0
  %v254 = vsel %vm238, 1, 0
  %v255 = vsel %vm239, 1, 0
  %v256 = vsel %vm240, 1, 0
  %v257 = vsel %vm241, 1, 0
  %v258 = vsel %vm242, 1, 0
  %v259 = vsel %vm243, 1, 0
  %v260 = vsel %vm244, 1, 0
  %v261 = vsel %vm245, 1, 0
  %v262 = vsel %vm246, 1, 0
  %v263 = vsel %vm247, 1, 0
  %v264 = vsel %vm248, 1, 0
  %v265 = vsel %vm249, 1, 0
  %v266 = vsel %vm250, 1, 0
  %v267 = vsel %vm251, 1, 0
  %v268 = vsel %vm252, 1, 0
  %v269 = vcvt.s32.f32 %v253
  %v270 = vcvt.s32.f32 %v254
  %v271 = vcvt.s32.f32 %v255
  %v272 = vcvt.s32.f32 %v256
  %v273 = vcvt.s32.f32 %v257
  %v274 = vcvt.s32.f32 %v258
  %v275 = vcvt.s32.f32 %v259
  %v276 = vcvt.s32.f32 %v260
  %v277 = vcvt.s32.f32 %v261
  %v278 = vcvt.s32.f32 %v262
  %v279 = vcvt.s32.f32 %v263
  %v280 = vcvt.s32.f32 %v264
  %v281 = vcvt.s32.f32 %v265
  %v282 = vcvt.s32.f32 %v266
  %v283 = vcvt.s32.f32 %v267
  %v284 = vcvt.s32.f32 %v268
  %vm285 = vcmask 7168
  %286 = vst.msk [vmem:[%s5] sm:$0xff] %vm285, %v269
  %287 = vst.msk [vmem:[%s5 + $0x8] sm:$0xff] %vm285, %v270
  %288 = vst.msk [vmem:[%s5 + $0x10] sm:$0xff] %vm285, %v271
  %289 = vst.msk [vmem:[%s5 + $0x18] sm:$0xff] %vm285, %v272
  %290 = vst.msk [vmem:[%s5 + $0x20] sm:$0xff] %vm285, %v273
  %291 = vst.msk [vmem:[%s5 + $0x28] sm:$0xff] %vm285, %v274
  %292 = vst.msk [vmem:[%s5 + $0x30] sm:$0xff] %vm285, %v275
  %293 = vst.msk [vmem:[%s5 + $0x38] sm:$0xff] %vm285, %v276
  %294 = vst.msk [vmem:[%s5 + $0x40] sm:$0xff] %vm285, %v277
  %295 = vst.msk [vmem:[%s5 + $0x48] sm:$0xff] %vm285, %v278
  %296 = vst.msk [vmem:[%s5 + $0x50] sm:$0xff] %vm285, %v279
  %297 = vst.msk [vmem:[%s5 + $0x58] sm:$0xff] %vm285, %v280
  %298 = vst.msk [vmem:[%s5 + $0x60] sm:$0xff] %vm285, %v281
  %299 = vst.msk [vmem:[%s5 + $0x68] sm:$0xff] %vm285, %v282
  %300 = vst.msk [vmem:[%s5 + $0x70] sm:$0xff] %vm285, %v283
  %301 = vst.msk [vmem:[%s5 + $0x78] sm:$0xff] %vm285, %v284
  // Predicated region
  $region22: #{graph_augmentation_forward.3} parent=0 // pred_check
    _
  $region23: #{graph_augmentation_forward.3} parent=0 // pred_check_branch
    %303 = sbr.rel (0) target = $region25
  $region24: #{graph_augmentation_forward.3} parent=0 // pred_region
    _
  $region25: #{graph_augmentation_forward.3} parent=0 // pred_fallthru
    _
  // Predicated region
  $region26: #{graph_augmentation_forward.3} parent=0 // pred_check
    _
  $region27: #{graph_augmentation_forward.3} parent=0 // pred_check_branch
    %305 = sbr.rel (0) target = $region29
  $region28: #{graph_augmentation_forward.3} parent=0 // pred_region
    _
  $region29: #{graph_augmentation_forward.3} parent=0 // pred_fallthru
    _

</llo_original>
